<compile_context>
chip_gen: v7x
topology: tpu7x:2x2x1
jax: 0.10.0
libtpu: 0.0.40
codegen_flags: <defaults>
</compile_context>

<pallas_src>
import math
import functools

import jax
import jax.numpy as jnp
import numpy as np
from jax import lax
from jax.experimental import pallas as pl
from jax.experimental.pallas import tpu as pltpu


def _attn_kernel(hs_ref, mask_ref, wqkv_ref, bqkv_ref,
                 ctx_ref, key_ref, val_ref,
                 *, heads_per_block, head_size, num_head_blocks):
    # One grid step == (one batch element, one block of heads).
    hb_width = heads_per_block * head_size
    hs = hs_ref[0]                      # (S, H)   bf16
    mask = mask_ref[0]                  # (1, S)   f32 additive mask

    # Fused QKV weight is resident full-width in VMEM; slice this head block's
    # [Wq_g | Wk_g | Wv_g] columns in-kernel (no per-batch re-DMA of weights).
    if num_head_blocks == 1:
        wblk = wqkv_ref[...]            # (H, 3*hb_width) bf16
        bblk = bqkv_ref[...]            # (1, 3*hb_width) f32
    else:
        col0 = pl.multiple_of(pl.program_id(1) * (3 * hb_width), 128)
        wblk = wqkv_ref[:, pl.ds(col0, 3 * hb_width)]
        bblk = bqkv_ref[:, pl.ds(col0, 3 * hb_width)]

    # Single wide projection matmul (bf16 MXU, f32 accumulation).  The
    # 1/sqrt(head_size) scale is already folded into the Wq/bq columns.
    qkv = jnp.dot(hs, wblk, preferred_element_type=jnp.float32) + bblk
    q = qkv[:, :hb_width]
    k = qkv[:, hb_width:2 * hb_width]
    v = qkv[:, 2 * hb_width:]

    qb = q.astype(jnp.bfloat16)
    kb = k.astype(jnp.bfloat16)
    vb = v.astype(jnp.bfloat16)

    ctx_tiles = []
    for h in range(heads_per_block):
        lo = h * head_size
        hi = lo + head_size
        qh = qb[:, lo:hi]               # (S, hd)
        kh = kb[:, lo:hi]               # (S, hd)
        vh = vb[:, lo:hi]               # (S, hd)

        # new_attn_cache in head-split layout (B, NH, S, hd) -- written directly.
        key_ref[0, h] = k[:, lo:hi].astype(key_ref.dtype)
        val_ref[0, h] = v[:, lo:hi].astype(val_ref.dtype)

        # scores[i, j] = sum_d q[i, d] * k[j, d]  (no explicit K transpose).
        scores = lax.dot_general(qh, kh, (((1,), (1,)), ((), ())),
                                 preferred_element_type=jnp.float32)   # (S, S)
        scores = scores + mask          # broadcast (1, S) over rows

        # Numerically stable softmax in f32; reciprocal on the EUP slot.
        m = jnp.max(scores, axis=-1, keepdims=True)
        e = jnp.exp(scores - m)
        denom = jnp.sum(e, axis=-1, keepdims=True)
        probs = e * pl.reciprocal(denom, approx=True)

        ctx_tiles.append(jnp.dot(probs.astype(jnp.bfloat16), vh,
                                 preferred_element_type=jnp.float32))  # (S, hd)

    # Keep per-head tiles in vregs; one dense lane-wide store of the head block.
    if heads_per_block == 1:
        ctx = ctx_tiles[0]
    else:
        ctx = jnp.concatenate(ctx_tiles, axis=-1)
    ctx_ref[0] = ctx.astype(ctx_ref.dtype)


def _pick_heads_per_block(num_heads, head_size, hidden_size):
    """Target 256-lane head blocks (fills v6e/v7x MXU width); guarantee the
    block width is a multiple of 128 or the full hidden size."""
    target = 256
    if hidden_size <= target:
        return num_heads
    hpb = max(1, target // head_size)
    while num_heads % hpb != 0:
        hpb -= 1
    hb_width = hpb * head_size
    if hb_width % 128 != 0 and hb_width != hidden_size:
        return num_heads                # fall back to a single full-width block
    return hpb


def bert_reshape_attention(hidden_states, attention_mask, params, *, num_heads,
                           out_dtype=jnp.bfloat16):
    """hidden_states: [B, S, H]; attention_mask: [B, 1, 1, S] additive mask.

    Returns (context [B, S, H], {'key','value'} each [B, NH, S, hd]).
    Outputs are bf16 by default (all matmuls are bf16 on the MXU anyway);
    pass out_dtype=jnp.float32 for the original PyTorch dtype.
    """
    B, S, H = hidden_states.shape
    assert H % num_heads == 0
    head_size = H // num_heads

    heads_per_block = _pick_heads_per_block(num_heads, head_size, H)
    num_head_blocks = num_heads // heads_per_block
    hb_width = heads_per_block * head_size

    scale = 1.0 / math.sqrt(head_size)

    # PyTorch nn.Linear stores W as (out, in); pre-transpose so the kernel does
    # x @ W^T.  Fold the attention scale into the query projection, then pack a
    # fused weight whose columns are, per head block g: [Wq_g | Wk_g | Wv_g].
    wq_t = params["wq"].T.astype(jnp.float32) * scale     # (H, H)
    wk_t = params["wk"].T.astype(jnp.float32)
    wv_t = params["wv"].T.astype(jnp.float32)

    def _wblocks(w):
        return w.reshape(H, num_head_blocks, hb_width)

    wqkv = jnp.stack([_wblocks(wq_t), _wblocks(wk_t), _wblocks(wv_t)], axis=2)
    wqkv = wqkv.reshape(H, 3 * H).astype(jnp.bfloat16)     # (H, 3H)

    bq = params["bq"].astype(jnp.float32) * scale
    bk = params["bk"].astype(jnp.float32)
    bv = params["bv"].astype(jnp.float32)

    def _bblocks(b):
        return b.reshape(num_head_blocks, hb_width)

    bqkv = jnp.stack([_bblocks(bq), _bblocks(bk), _bblocks(bv)], axis=1)
    bqkv = bqkv.reshape(1, 3 * H).astype(jnp.float32)      # (1, 3H)

    hs_bf16 = hidden_states.astype(jnp.bfloat16)
    mask = attention_mask.reshape(B, 1, S).astype(jnp.float32)

    kernel = functools.partial(_attn_kernel,
                               heads_per_block=heads_per_block,
                               head_size=head_size,
                               num_head_blocks=num_head_blocks)

    out_itemsize = jnp.dtype(out_dtype).itemsize
    vmem_est = (
        2 * (H * 3 * H * 2)                                # fused weights (bf16, 2 bufs)
        + 2 * (3 * H * 4)                                  # fused bias
        + 2 * (S * H * 2)                                  # hidden_states block
        + 2 * (S * 4)                                      # mask block
        + 2 * (S * hb_width * out_itemsize)                # ctx output block
        + 2 * 2 * (hb_width * S * out_itemsize)            # key + value output blocks
        + 3 * (S * S * 4)                                  # scores / exp / probs (f32)
        + 2 * (S * 3 * hb_width * 4)                       # qkv temporaries
    )
    vmem_limit = int(min(96 * 1024 * 1024, max(32 * 1024 * 1024, 2 * vmem_est)))

    cache_spec = pl.BlockSpec((1, heads_per_block, S, head_size),
                              lambda b, g: (b, g, 0, 0))

    ctx, key, val = pl.pallas_call(
        kernel,
        grid=(B, num_head_blocks),
        in_specs=[
            pl.BlockSpec((1, S, H), lambda b, g: (b, 0, 0)),    # hidden_states (resident over g)
            pl.BlockSpec((1, 1, S), lambda b, g: (b, 0, 0)),    # additive mask
            pl.BlockSpec((H, 3 * H), lambda b, g: (0, 0)),      # fused [Wq|Wk|Wv] (resident)
            pl.BlockSpec((1, 3 * H), lambda b, g: (0, 0)),      # fused bias (resident)
        ],
        out_specs=[
            pl.BlockSpec((1, S, hb_width), lambda b, g: (b, 0, g)),   # ctx (lane-dense slab)
            cache_spec,                                               # cache key  (B,NH,S,hd)
            cache_spec,                                               # cache value(B,NH,S,hd)
        ],
        out_shape=[
            jax.ShapeDtypeStruct((B, S, H), out_dtype),
            jax.ShapeDtypeStruct((B, num_heads, S, head_size), out_dtype),
            jax.ShapeDtypeStruct((B, num_heads, S, head_size), out_dtype),
        ],
        compiler_params=pltpu.CompilerParams(
            dimension_semantics=("parallel", "parallel"),
            vmem_limit_bytes=vmem_limit),
    )(hs_bf16, mask, wqkv, bqkv)

    new_attn_cache = {"key": key, "value": val}
    return ctx, new_attn_cache


def _reference(hidden_states, attention_mask, params, *, num_heads):
    """Pure-JAX reference mirroring the PyTorch forward (attn_cache=None)."""
    B, S, H = hidden_states.shape
    hd = H // num_heads
    q = hidden_states @ params["wq"].T + params["bq"]
    k = hidden_states @ params["wk"].T + params["bk"]
    v = hidden_states @ params["wv"].T + params["bv"]

    def split(x):
        return x.reshape(B, S, num_heads, hd).transpose(0, 2, 1, 3)

    qh, kh, vh = split(q), split(k), split(v)
    scores = jnp.einsum("bhqd,bhkd->bhqk", qh, kh) / math.sqrt(hd)
    scores = scores + attention_mask
    probs = jax.nn.softmax(scores, axis=-1)
    ctx = jnp.einsum("bhqk,bhkd->bhqd", probs, vh)
    ctx = ctx.transpose(0, 2, 1, 3).reshape(B, S, H)
    return ctx, {"key": kh, "value": vh}


if __name__ == "__main__":
    B, S, H, NH = 2, 8, 32, 4

    key = jax.random.PRNGKey(0)
    k_hs, k_wq, k_wk, k_wv, k_bq, k_bk, k_bv = jax.random.split(key, 7)

    hidden_states = jax.random.normal(k_hs, (B, S, H), dtype=jnp.float32)

    params = {
        "wq": 0.02 * jax.random.normal(k_wq, (H, H), dtype=jnp.float32),
        "wk": 0.02 * jax.random.normal(k_wk, (H, H), dtype=jnp.float32),
        "wv": 0.02 * jax.random.normal(k_wv, (H, H), dtype=jnp.float32),
        "bq": 0.02 * jax.random.normal(k_bq, (H,), dtype=jnp.float32),
        "bk": 0.02 * jax.random.normal(k_bk, (H,), dtype=jnp.float32),
        "bv": 0.02 * jax.random.normal(k_bv, (H,), dtype=jnp.float32),
    }

    # BERT-style extended additive mask: last 2 tokens of batch element 1 masked.
    valid = jnp.ones((B, S), dtype=jnp.float32)
    valid = valid.at[1, -2:].set(0.0)
    attention_mask = (1.0 - valid)[:, None, None, :] * -10000.0   # [B,1,1,S]

    ctx, cache = bert_reshape_attention(hidden_states, attention_mask, params,
                                        num_heads=NH)
    jax.block_until_ready(ctx)

    ref_ctx, ref_cache = _reference(hidden_states, attention_mask, params,
                                    num_heads=NH)

    # Tolerances loosened for bf16 MXU matmuls, bf16 outputs and approx-reciprocal softmax.
    np.testing.assert_allclose(np.asarray(ctx.astype(jnp.float32)),
                               np.asarray(ref_ctx), rtol=2e-2, atol=2e-2)
    np.testing.assert_allclose(np.asarray(cache["key"].astype(jnp.float32)),
                               np.asarray(ref_cache["key"]),
                               rtol=2e-2, atol=2e-2)
    np.testing.assert_allclose(np.asarray(cache["value"].astype(jnp.float32)),
                               np.asarray(ref_cache["value"]),
                               rtol=2e-2, atol=2e-2)

    print("KERNEL_OK")
</pallas_src>

<mosaic_0001>
module attributes {stable_mosaic.version = 11 : i64} {
  func.func @_attn_kernel(%arg0: i32, %arg1: i32, %arg2: memref<1x8x32xbf16, #tpu.memory_space<vmem>>, %arg3: memref<1x1x8xf32, #tpu.memory_space<vmem>>, %arg4: memref<32x96xbf16, #tpu.memory_space<vmem>>, %arg5: memref<1x96xf32, #tpu.memory_space<vmem>>, %arg6: memref<1x8x32xbf16, #tpu.memory_space<vmem>>, %arg7: memref<1x4x8x8xbf16, #tpu.memory_space<vmem>>, %arg8: memref<1x4x8x8xbf16, #tpu.memory_space<vmem>>) attributes {dimension_semantics = [#tpu.dimension_semantics<parallel>, #tpu.dimension_semantics<parallel>], iteration_bounds = array<i64: 2, 1>, scalar_prefetch = 0 : i64, scratch_operands = 0 : i64, tpu.core_type = #tpu.core_type<tc>, window_params = [{transform_indices = @transform_0, window_bounds = array<i64: 1, 8, 32>}, {transform_indices = @transform_1, window_bounds = array<i64: 1, 1, 8>}, {pipeline_mode = #tpu.pipeline_mode<synchronous>, transform_indices = @transform_2, window_bounds = array<i64: 32, 96>}, {pipeline_mode = #tpu.pipeline_mode<synchronous>, transform_indices = @transform_3, window_bounds = array<i64: 1, 96>}, {transform_indices = @transform_4, window_bounds = array<i64: 1, 8, 32>}, {transform_indices = @transform_5, window_bounds = array<i64: 1, 4, 8, 8>}, {transform_indices = @transform_6, window_bounds = array<i64: 1, 4, 8, 8>}]} {
    %c0 = arith.constant 0 : index
    %c0_0 = arith.constant 0 : index
    %c0_1 = arith.constant 0 : index
    %0 = vector.load %arg2[%c0, %c0_0, %c0_1] : memref<1x8x32xbf16, #tpu.memory_space<vmem>>, vector<1x8x32xbf16>
    %1 = vector.shape_cast %0 : vector<1x8x32xbf16> to vector<8x32xbf16>
    %c0_2 = arith.constant 0 : index
    %c0_3 = arith.constant 0 : index
    %c0_4 = arith.constant 0 : index
    %2 = vector.load %arg3[%c0_2, %c0_3, %c0_4] : memref<1x1x8xf32, #tpu.memory_space<vmem>>, vector<1x1x8xf32>
    %3 = vector.shape_cast %2 : vector<1x1x8xf32> to vector<1x8xf32>
    %c0_5 = arith.constant 0 : index
    %c0_6 = arith.constant 0 : index
    %4 = vector.load %arg4[%c0_5, %c0_6] : memref<32x96xbf16, #tpu.memory_space<vmem>>, vector<32x96xbf16>
    %c0_7 = arith.constant 0 : index
    %c0_8 = arith.constant 0 : index
    %5 = vector.load %arg5[%c0_7, %c0_8] : memref<1x96xf32, #tpu.memory_space<vmem>>, vector<1x96xf32>
    %cst = arith.constant dense<0.000000e+00> : vector<8x96xf32>
    %6 = tpu.matmul %1, %4, %cst {dimension_numbers = #tpu.dot_dimension_numbers<[1], [0], [0], [1], [0, 0, 1, 1], [], []>} : vector<8x32xbf16>, vector<32x96xbf16>, vector<8x96xf32> -> vector<8x96xf32>
    %7 = vector.broadcast %5 : vector<1x96xf32> to vector<8x96xf32>
    %8 = arith.addf %6, %7 : vector<8x96xf32>
    %9 = vector.extract_strided_slice %8 {offsets = [0, 0], sizes = [8, 32], strides = [1, 1]} : vector<8x96xf32> to vector<8x32xf32>
    %10 = vector.extract_strided_slice %8 {offsets = [0, 32], sizes = [8, 32], strides = [1, 1]} : vector<8x96xf32> to vector<8x32xf32>
    %11 = vector.extract_strided_slice %8 {offsets = [0, 64], sizes = [8, 32], strides = [1, 1]} : vector<8x96xf32> to vector<8x32xf32>
    %12 = arith.truncf %9 : vector<8x32xf32> to vector<8x32xbf16>
    %13 = arith.truncf %10 : vector<8x32xf32> to vector<8x32xbf16>
    %14 = arith.truncf %11 : vector<8x32xf32> to vector<8x32xbf16>
    %15 = vector.extract_strided_slice %12 {offsets = [0, 0], sizes = [8, 8], strides = [1, 1]} : vector<8x32xbf16> to vector<8x8xbf16>
    %16 = vector.extract_strided_slice %13 {offsets = [0, 0], sizes = [8, 8], strides = [1, 1]} : vector<8x32xbf16> to vector<8x8xbf16>
    %17 = vector.extract_strided_slice %14 {offsets = [0, 0], sizes = [8, 8], strides = [1, 1]} : vector<8x32xbf16> to vector<8x8xbf16>
    %18 = vector.extract_strided_slice %10 {offsets = [0, 0], sizes = [8, 8], strides = [1, 1]} : vector<8x32xf32> to vector<8x8xf32>
    %19 = arith.truncf %18 : vector<8x8xf32> to vector<8x8xbf16>
    %c0_9 = arith.constant 0 : index
    %c0_10 = arith.constant 0 : index
    %c0_11 = arith.constant 0 : index
    %c0_12 = arith.constant 0 : index
    %20 = vector.load %arg7[%c0_9, %c0_10, %c0_11, %c0_12] : memref<1x4x8x8xbf16, #tpu.memory_space<vmem>>, vector<1x1x8x8xbf16>
    %21 = vector.shape_cast %20 : vector<1x1x8x8xbf16> to vector<8x8xbf16>
    %22 = vector.shape_cast %19 : vector<8x8xbf16> to vector<1x1x8x8xbf16>
    tpu.vector_store %arg7[%c0_9, %c0_10, %c0_11, %c0_12], %22 {strides = array<i32>} : memref<1x4x8x8xbf16, #tpu.memory_space<vmem>>, vector<1x1x8x8xbf16>,
    %23 = vector.extract_strided_slice %11 {offsets = [0, 0], sizes = [8, 8], strides = [1, 1]} : vector<8x32xf32> to vector<8x8xf32>
    %24 = arith.truncf %23 : vector<8x8xf32> to vector<8x8xbf16>
    %c0_13 = arith.constant 0 : index
    %c0_14 = arith.constant 0 : index
    %c0_15 = arith.constant 0 : index
    %c0_16 = arith.constant 0 : index
    %25 = vector.load %arg8[%c0_13, %c0_14, %c0_15, %c0_16] : memref<1x4x8x8xbf16, #tpu.memory_space<vmem>>, vector<1x1x8x8xbf16>
    %26 = vector.shape_cast %25 : vector<1x1x8x8xbf16> to vector<8x8xbf16>
    %27 = vector.shape_cast %24 : vector<8x8xbf16> to vector<1x1x8x8xbf16>
    tpu.vector_store %arg8[%c0_13, %c0_14, %c0_15, %c0_16], %27 {strides = array<i32>} : memref<1x4x8x8xbf16, #tpu.memory_space<vmem>>, vector<1x1x8x8xbf16>,
    %cst_17 = arith.constant dense<0.000000e+00> : vector<8x8xf32>
    %28 = tpu.matmul %15, %16, %cst_17 {dimension_numbers = #tpu.dot_dimension_numbers<[1], [1], [0], [0], [0, 0, 1, 0], [], []>} : vector<8x8xbf16>, vector<8x8xbf16>, vector<8x8xf32> -> vector<8x8xf32>
    %29 = vector.broadcast %3 : vector<1x8xf32> to vector<8x8xf32>
    %30 = arith.addf %28, %29 : vector<8x8xf32>
    %cst_18 = arith.constant dense<0xFF800000> : vector<8xf32>
    %31 = vector.multi_reduction <maximumf>, %30, %cst_18 [1] : vector<8x8xf32> to vector<8xf32>
    %32 = vector.shape_cast %31 : vector<8xf32> to vector<8x1xf32>
    %33 = vector.broadcast %32 : vector<8x1xf32> to vector<8x8xf32>
    %34 = arith.subf %30, %33 : vector<8x8xf32>
    %35 = math.exp %34 : vector<8x8xf32>
    %cst_19 = arith.constant dense<0.000000e+00> : vector<8xf32>
    %36 = vector.multi_reduction <add>, %35, %cst_19 [1] : vector<8x8xf32> to vector<8xf32>
    %37 = vector.shape_cast %36 : vector<8xf32> to vector<8x1xf32>
    %38 = tpu.reciprocal %37 {approx = true} : vector<8x1xf32> -> vector<8x1xf32>
    %39 = vector.broadcast %38 : vector<8x1xf32> to vector<8x8xf32>
    %40 = arith.mulf %35, %39 : vector<8x8xf32>
    %41 = arith.truncf %40 : vector<8x8xf32> to vector<8x8xbf16>
    %cst_20 = arith.constant dense<0.000000e+00> : vector<8x8xf32>
    %42 = tpu.matmul %41, %17, %cst_20 {dimension_numbers = #tpu.dot_dimension_numbers<[1], [0], [0], [1], [0, 0, 1, 1], [], []>} : vector<8x8xbf16>, vector<8x8xbf16>, vector<8x8xf32> -> vector<8x8xf32>
    %43 = vector.extract_strided_slice %12 {offsets = [0, 8], sizes = [8, 8], strides = [1, 1]} : vector<8x32xbf16> to vector<8x8xbf16>
    %44 = vector.extract_strided_slice %13 {offsets = [0, 8], sizes = [8, 8], strides = [1, 1]} : vector<8x32xbf16> to vector<8x8xbf16>
    %45 = vector.extract_strided_slice %14 {offsets = [0, 8], sizes = [8, 8], strides = [1, 1]} : vector<8x32xbf16> to vector<8x8xbf16>
    %46 = vector.extract_strided_slice %10 {offsets = [0, 8], sizes = [8, 8], strides = [1, 1]} : vector<8x32xf32> to vector<8x8xf32>
    %47 = arith.truncf %46 : vector<8x8xf32> to vector<8x8xbf16>
    %c0_21 = arith.constant 0 : index
    %c1 = arith.constant 1 : index
    %c0_22 = arith.constant 0 : index
    %c0_23 = arith.constant 0 : index
    %48 = vector.load %arg7[%c0_21, %c1, %c0_22, %c0_23] : memref<1x4x8x8xbf16, #tpu.memory_space<vmem>>, vector<1x1x8x8xbf16>
    %49 = vector.shape_cast %48 : vector<1x1x8x8xbf16> to vector<8x8xbf16>
    %50 = vector.shape_cast %47 : vector<8x8xbf16> to vector<1x1x8x8xbf16>
    tpu.vector_store %arg7[%c0_21, %c1, %c0_22, %c0_23], %50 {strides = array<i32>} : memref<1x4x8x8xbf16, #tpu.memory_space<vmem>>, vector<1x1x8x8xbf16>,
    %51 = vector.extract_strided_slice %11 {offsets = [0, 8], sizes = [8, 8], strides = [1, 1]} : vector<8x32xf32> to vector<8x8xf32>
    %52 = arith.truncf %51 : vector<8x8xf32> to vector<8x8xbf16>
    %c0_24 = arith.constant 0 : index
    %c1_25 = arith.constant 1 : index
    %c0_26 = arith.constant 0 : index
    %c0_27 = arith.constant 0 : index
    %53 = vector.load %arg8[%c0_24, %c1_25, %c0_26, %c0_27] : memref<1x4x8x8xbf16, #tpu.memory_space<vmem>>, vector<1x1x8x8xbf16>
    %54 = vector.shape_cast %53 : vector<1x1x8x8xbf16> to vector<8x8xbf16>
    %55 = vector.shape_cast %52 : vector<8x8xbf16> to vector<1x1x8x8xbf16>
    tpu.vector_store %arg8[%c0_24, %c1_25, %c0_26, %c0_27], %55 {strides = array<i32>} : memref<1x4x8x8xbf16, #tpu.memory_space<vmem>>, vector<1x1x8x8xbf16>,
    %cst_28 = arith.constant dense<0.000000e+00> : vector<8x8xf32>
    %56 = tpu.matmul %43, %44, %cst_28 {dimension_numbers = #tpu.dot_dimension_numbers<[1], [1], [0], [0], [0, 0, 1, 0], [], []>} : vector<8x8xbf16>, vector<8x8xbf16>, vector<8x8xf32> -> vector<8x8xf32>
    %57 = vector.broadcast %3 : vector<1x8xf32> to vector<8x8xf32>
    %58 = arith.addf %56, %57 : vector<8x8xf32>
    %cst_29 = arith.constant dense<0xFF800000> : vector<8xf32>
    %59 = vector.multi_reduction <maximumf>, %58, %cst_29 [1] : vector<8x8xf32> to vector<8xf32>
    %60 = vector.shape_cast %59 : vector<8xf32> to vector<8x1xf32>
    %61 = vector.broadcast %60 : vector<8x1xf32> to vector<8x8xf32>
    %62 = arith.subf %58, %61 : vector<8x8xf32>
    %63 = math.exp %62 : vector<8x8xf32>
    %cst_30 = arith.constant dense<0.000000e+00> : vector<8xf32>
    %64 = vector.multi_reduction <add>, %63, %cst_30 [1] : vector<8x8xf32> to vector<8xf32>
    %65 = vector.shape_cast %64 : vector<8xf32> to vector<8x1xf32>
    %66 = tpu.reciprocal %65 {approx = true} : vector<8x1xf32> -> vector<8x1xf32>
    %67 = vector.broadcast %66 : vector<8x1xf32> to vector<8x8xf32>
    %68 = arith.mulf %63, %67 : vector<8x8xf32>
    %69 = arith.truncf %68 : vector<8x8xf32> to vector<8x8xbf16>
    %cst_31 = arith.constant dense<0.000000e+00> : vector<8x8xf32>
    %70 = tpu.matmul %69, %45, %cst_31 {dimension_numbers = #tpu.dot_dimension_numbers<[1], [0], [0], [1], [0, 0, 1, 1], [], []>} : vector<8x8xbf16>, vector<8x8xbf16>, vector<8x8xf32> -> vector<8x8xf32>
    %71 = vector.extract_strided_slice %12 {offsets = [0, 16], sizes = [8, 8], strides = [1, 1]} : vector<8x32xbf16> to vector<8x8xbf16>
    %72 = vector.extract_strided_slice %13 {offsets = [0, 16], sizes = [8, 8], strides = [1, 1]} : vector<8x32xbf16> to vector<8x8xbf16>
    %73 = vector.extract_strided_slice %14 {offsets = [0, 16], sizes = [8, 8], strides = [1, 1]} : vector<8x32xbf16> to vector<8x8xbf16>
    %74 = vector.extract_strided_slice %10 {offsets = [0, 16], sizes = [8, 8], strides = [1, 1]} : vector<8x32xf32> to vector<8x8xf32>
    %75 = arith.truncf %74 : vector<8x8xf32> to vector<8x8xbf16>
    %c0_32 = arith.constant 0 : index
    %c2 = arith.constant 2 : index
    %c0_33 = arith.constant 0 : index
    %c0_34 = arith.constant 0 : index
    %76 = vector.load %arg7[%c0_32, %c2, %c0_33, %c0_34] : memref<1x4x8x8xbf16, #tpu.memory_space<vmem>>, vector<1x1x8x8xbf16>
    %77 = vector.shape_cast %76 : vector<1x1x8x8xbf16> to vector<8x8xbf16>
    %78 = vector.shape_cast %75 : vector<8x8xbf16> to vector<1x1x8x8xbf16>
    tpu.vector_store %arg7[%c0_32, %c2, %c0_33, %c0_34], %78 {strides = array<i32>} : memref<1x4x8x8xbf16, #tpu.memory_space<vmem>>, vector<1x1x8x8xbf16>,
    %79 = vector.extract_strided_slice %11 {offsets = [0, 16], sizes = [8, 8], strides = [1, 1]} : vector<8x32xf32> to vector<8x8xf32>
    %80 = arith.truncf %79 : vector<8x8xf32> to vector<8x8xbf16>
    %c0_35 = arith.constant 0 : index
    %c2_36 = arith.constant 2 : index
    %c0_37 = arith.constant 0 : index
    %c0_38 = arith.constant 0 : index
    %81 = vector.load %arg8[%c0_35, %c2_36, %c0_37, %c0_38] : memref<1x4x8x8xbf16, #tpu.memory_space<vmem>>, vector<1x1x8x8xbf16>
    %82 = vector.shape_cast %81 : vector<1x1x8x8xbf16> to vector<8x8xbf16>
    %83 = vector.shape_cast %80 : vector<8x8xbf16> to vector<1x1x8x8xbf16>
    tpu.vector_store %arg8[%c0_35, %c2_36, %c0_37, %c0_38], %83 {strides = array<i32>} : memref<1x4x8x8xbf16, #tpu.memory_space<vmem>>, vector<1x1x8x8xbf16>,
    %cst_39 = arith.constant dense<0.000000e+00> : vector<8x8xf32>
    %84 = tpu.matmul %71, %72, %cst_39 {dimension_numbers = #tpu.dot_dimension_numbers<[1], [1], [0], [0], [0, 0, 1, 0], [], []>} : vector<8x8xbf16>, vector<8x8xbf16>, vector<8x8xf32> -> vector<8x8xf32>
    %85 = vector.broadcast %3 : vector<1x8xf32> to vector<8x8xf32>
    %86 = arith.addf %84, %85 : vector<8x8xf32>
    %cst_40 = arith.constant dense<0xFF800000> : vector<8xf32>
    %87 = vector.multi_reduction <maximumf>, %86, %cst_40 [1] : vector<8x8xf32> to vector<8xf32>
    %88 = vector.shape_cast %87 : vector<8xf32> to vector<8x1xf32>
    %89 = vector.broadcast %88 : vector<8x1xf32> to vector<8x8xf32>
    %90 = arith.subf %86, %89 : vector<8x8xf32>
    %91 = math.exp %90 : vector<8x8xf32>
    %cst_41 = arith.constant dense<0.000000e+00> : vector<8xf32>
    %92 = vector.multi_reduction <add>, %91, %cst_41 [1] : vector<8x8xf32> to vector<8xf32>
    %93 = vector.shape_cast %92 : vector<8xf32> to vector<8x1xf32>
    %94 = tpu.reciprocal %93 {approx = true} : vector<8x1xf32> -> vector<8x1xf32>
    %95 = vector.broadcast %94 : vector<8x1xf32> to vector<8x8xf32>
    %96 = arith.mulf %91, %95 : vector<8x8xf32>
    %97 = arith.truncf %96 : vector<8x8xf32> to vector<8x8xbf16>
    %cst_42 = arith.constant dense<0.000000e+00> : vector<8x8xf32>
    %98 = tpu.matmul %97, %73, %cst_42 {dimension_numbers = #tpu.dot_dimension_numbers<[1], [0], [0], [1], [0, 0, 1, 1], [], []>} : vector<8x8xbf16>, vector<8x8xbf16>, vector<8x8xf32> -> vector<8x8xf32>
    %99 = vector.extract_strided_slice %12 {offsets = [0, 24], sizes = [8, 8], strides = [1, 1]} : vector<8x32xbf16> to vector<8x8xbf16>
    %100 = vector.extract_strided_slice %13 {offsets = [0, 24], sizes = [8, 8], strides = [1, 1]} : vector<8x32xbf16> to vector<8x8xbf16>
    %101 = vector.extract_strided_slice %14 {offsets = [0, 24], sizes = [8, 8], strides = [1, 1]} : vector<8x32xbf16> to vector<8x8xbf16>
    %102 = vector.extract_strided_slice %10 {offsets = [0, 24], sizes = [8, 8], strides = [1, 1]} : vector<8x32xf32> to vector<8x8xf32>
    %103 = arith.truncf %102 : vector<8x8xf32> to vector<8x8xbf16>
    %c0_43 = arith.constant 0 : index
    %c3 = arith.constant 3 : index
    %c0_44 = arith.constant 0 : index
    %c0_45 = arith.constant 0 : index
    %104 = vector.load %arg7[%c0_43, %c3, %c0_44, %c0_45] : memref<1x4x8x8xbf16, #tpu.memory_space<vmem>>, vector<1x1x8x8xbf16>
    %105 = vector.shape_cast %104 : vector<1x1x8x8xbf16> to vector<8x8xbf16>
    %106 = vector.shape_cast %103 : vector<8x8xbf16> to vector<1x1x8x8xbf16>
    tpu.vector_store %arg7[%c0_43, %c3, %c0_44, %c0_45], %106 {strides = array<i32>} : memref<1x4x8x8xbf16, #tpu.memory_space<vmem>>, vector<1x1x8x8xbf16>,
    %107 = vector.extract_strided_slice %11 {offsets = [0, 24], sizes = [8, 8], strides = [1, 1]} : vector<8x32xf32> to vector<8x8xf32>
    %108 = arith.truncf %107 : vector<8x8xf32> to vector<8x8xbf16>
    %c0_46 = arith.constant 0 : index
    %c3_47 = arith.constant 3 : index
    %c0_48 = arith.constant 0 : index
    %c0_49 = arith.constant 0 : index
    %109 = vector.load %arg8[%c0_46, %c3_47, %c0_48, %c0_49] : memref<1x4x8x8xbf16, #tpu.memory_space<vmem>>, vector<1x1x8x8xbf16>
    %110 = vector.shape_cast %109 : vector<1x1x8x8xbf16> to vector<8x8xbf16>
    %111 = vector.shape_cast %108 : vector<8x8xbf16> to vector<1x1x8x8xbf16>
    tpu.vector_store %arg8[%c0_46, %c3_47, %c0_48, %c0_49], %111 {strides = array<i32>} : memref<1x4x8x8xbf16, #tpu.memory_space<vmem>>, vector<1x1x8x8xbf16>,
    %cst_50 = arith.constant dense<0.000000e+00> : vector<8x8xf32>
    %112 = tpu.matmul %99, %100, %cst_50 {dimension_numbers = #tpu.dot_dimension_numbers<[1], [1], [0], [0], [0, 0, 1, 0], [], []>} : vector<8x8xbf16>, vector<8x8xbf16>, vector<8x8xf32> -> vector<8x8xf32>
    %113 = vector.broadcast %3 : vector<1x8xf32> to vector<8x8xf32>
    %114 = arith.addf %112, %113 : vector<8x8xf32>
    %cst_51 = arith.constant dense<0xFF800000> : vector<8xf32>
    %115 = vector.multi_reduction <maximumf>, %114, %cst_51 [1] : vector<8x8xf32> to vector<8xf32>
    %116 = vector.shape_cast %115 : vector<8xf32> to vector<8x1xf32>
    %117 = vector.broadcast %116 : vector<8x1xf32> to vector<8x8xf32>
    %118 = arith.subf %114, %117 : vector<8x8xf32>
    %119 = math.exp %118 : vector<8x8xf32>
    %cst_52 = arith.constant dense<0.000000e+00> : vector<8xf32>
    %120 = vector.multi_reduction <add>, %119, %cst_52 [1] : vector<8x8xf32> to vector<8xf32>
    %121 = vector.shape_cast %120 : vector<8xf32> to vector<8x1xf32>
    %122 = tpu.reciprocal %121 {approx = true} : vector<8x1xf32> -> vector<8x1xf32>
    %123 = vector.broadcast %122 : vector<8x1xf32> to vector<8x8xf32>
    %124 = arith.mulf %119, %123 : vector<8x8xf32>
    %125 = arith.truncf %124 : vector<8x8xf32> to vector<8x8xbf16>
    %cst_53 = arith.constant dense<0.000000e+00> : vector<8x8xf32>
    %126 = tpu.matmul %125, %101, %cst_53 {dimension_numbers = #tpu.dot_dimension_numbers<[1], [0], [0], [1], [0, 0, 1, 1], [], []>} : vector<8x8xbf16>, vector<8x8xbf16>, vector<8x8xf32> -> vector<8x8xf32>
    %127 = tpu.concatenate %42, %70, %98, %126 in 1 : vector<8x8xf32>, vector<8x8xf32>, vector<8x8xf32>, vector<8x8xf32> -> vector<8x32xf32>
    %128 = arith.truncf %127 : vector<8x32xf32> to vector<8x32xbf16>
    %c0_54 = arith.constant 0 : index
    %c0_55 = arith.constant 0 : index
    %c0_56 = arith.constant 0 : index
    %129 = vector.load %arg6[%c0_54, %c0_55, %c0_56] : memref<1x8x32xbf16, #tpu.memory_space<vmem>>, vector<1x8x32xbf16>
    %130 = vector.shape_cast %129 : vector<1x8x32xbf16> to vector<8x32xbf16>
    %131 = vector.shape_cast %128 : vector<8x32xbf16> to vector<1x8x32xbf16>
    tpu.vector_store %arg6[%c0_54, %c0_55, %c0_56], %131 {strides = array<i32>} : memref<1x8x32xbf16, #tpu.memory_space<vmem>>, vector<1x8x32xbf16>,
    return
  }
  func.func @transform_0(%arg0: i32, %arg1: i32) -> (i32, i32, i32) {
    %c0_i32 = arith.constant 0 : i32
    %c0_i32_0 = arith.constant 0 : i32
    %c0_i32_1 = arith.constant 0 : i32
    return %arg0, %c0_i32, %c0_i32_0 : i32, i32, i32
  }
  func.func @transform_1(%arg0: i32, %arg1: i32) -> (i32, i32, i32) {
    %c0_i32 = arith.constant 0 : i32
    %c0_i32_0 = arith.constant 0 : i32
    %c0_i32_1 = arith.constant 0 : i32
    return %arg0, %c0_i32, %c0_i32_0 : i32, i32, i32
  }
  func.func @transform_2(%arg0: i32, %arg1: i32) -> (i32, i32) {
    %c0_i32 = arith.constant 0 : i32
    %c0_i32_0 = arith.constant 0 : i32
    %c0_i32_1 = arith.constant 0 : i32
    return %c0_i32, %c0_i32_0 : i32, i32
  }
  func.func @transform_3(%arg0: i32, %arg1: i32) -> (i32, i32) {
    %c0_i32 = arith.constant 0 : i32
    %c0_i32_0 = arith.constant 0 : i32
    %c0_i32_1 = arith.constant 0 : i32
    return %c0_i32, %c0_i32_0 : i32, i32
  }
  func.func @transform_4(%arg0: i32, %arg1: i32) -> (i32, i32, i32) {
    %c0_i32 = arith.constant 0 : i32
    %c0_i32_0 = arith.constant 0 : i32
    return %arg0, %c0_i32, %arg1 : i32, i32, i32
  }
  func.func @transform_5(%arg0: i32, %arg1: i32) -> (i32, i32, i32, i32) {
    %c0_i32 = arith.constant 0 : i32
    %c0_i32_0 = arith.constant 0 : i32
    %c0_i32_1 = arith.constant 0 : i32
    return %arg0, %arg1, %c0_i32, %c0_i32_0 : i32, i32, i32, i32
  }
  func.func @transform_6(%arg0: i32, %arg1: i32) -> (i32, i32, i32, i32) {
    %c0_i32 = arith.constant 0 : i32
    %c0_i32_0 = arith.constant 0 : i32
    %c0_i32_1 = arith.constant 0 : i32
    return %arg0, %arg1, %c0_i32, %c0_i32_0 : i32, i32, i32, i32
  }
}

</mosaic_0001>

<llo_original>
// kernel: tpu_custom_call.1
$region0: #{tpu_custom_call.1}
  #allocation0 [shape = 'u32[]', space=smem, size = 0x4, offset = 0x4, fixed_abs, tag = 'smem constant byte address 0x4 - core index']
  #allocation1 [shape = 'u32[144,128]{1,0:T(1,128)}', space=vmem, size = 0x12000, scoped, tag = 'internal scratch']
  %s0 = inlined_call_operand.hbm [shape: bf16[2,8,32], index: 0, kind: input, shape index: {}]
  %s1 = inlined_call_operand.vmem [shape: f32[2,1,8], index: 1, kind: input, shape index: {}]
  %s2 = inlined_call_operand.hbm [shape: bf16[32,96], index: 2, kind: input, shape index: {}]
  %s3 = inlined_call_operand.vmem [shape: f32[1,96], index: 3, kind: input, shape index: {}]
  %s4 = inlined_call_operand.hbm [shape: bf16[2,8,32], index: 4, kind: output, shape index: {0}]
  %s5 = inlined_call_operand.hbm [shape: bf16[2,4,8,8], index: 5, kind: output, shape index: {1}]
  %s6 = inlined_call_operand.hbm [shape: bf16[2,4,8,8], index: 6, kind: output, shape index: {2}]
  %7 = xla_tuple %s4, %s5, %s6
  %s8 = sld [smem:[#allocation0]]
  $region73: #{tpu_custom_call.1} parent=0
    _
  %s10 = ssub.s32 1, %s8
  %s11 = scalar_select 0, %s10, %s8
  $region1: #{tpu_custom_call.1} parent=0
    #allocation2 [shape = 'u8[4096]{0}', space=vmem, size = 0x1000, scoped, tag = 'input window, operand 0']
    #allocation3 [shape = 's32[2]{0}', space=sflag, size = 0x8, scoped, tag = 'scoped memory for tpu_custom_call.1']
    #allocation4 [shape = 's32[2]{0}', space=sflag, size = 0x8, scoped, tag = 'scoped memory for tpu_custom_call.1']
    #allocation5 [shape = 'u8[8192]{0}', space=vmem, size = 0x2000, scoped, tag = 'input window, operand 2, single buffered']
    #allocation6 [shape = 's32[1]{0}', space=sflag, size = 0x4, scoped, tag = 'scoped memory for tpu_custom_call.1']
    #allocation7 [shape = 'u8[4096]{0}', space=vmem, size = 0x1000, scoped, tag = 'output window, operand 0']
    #allocation8 [shape = 'u8[16384]{0}', space=vmem, size = 0x4000, scoped, tag = 'output window, operand 1']
    #allocation9 [shape = 's32[2]{0}', space=sflag, size = 0x8, scoped, tag = 'scoped memory for tpu_custom_call.1']
    #allocation10 [shape = 'u8[16384]{0}', space=vmem, size = 0x4000, scoped, tag = 'output window, operand 2']
    %12 = vsyncpa [#allocation3], 0
    %s13 = scalar_lea.sflag [#allocation3], 1
    %14 = vsyncpa %s13, 0
    %15 = vsyncpa [#allocation6], 0
    %16 = vsyncpa [#allocation4], 0
    %s17 = scalar_lea.sflag [#allocation4], 1
    %18 = vsyncpa %s17, 0
    %19 = vsyncpa [#allocation9], 0
    %s20 = scalar_lea.sflag [#allocation9], 1
    %21 = vsyncpa %s20, 0
    loop: start=0, step=1, limit=4
    $region2: #{tpu_custom_call.1} parent=1 // loop_pre_header
      _
    $region3: #{tpu_custom_call.1} parent=1 // loop_header
      %s23 = sphi 0, %s27
      %p24 = scmp.ge.s32.totalorder %s23, 4
      %s30 = sphi 0, %s42
      %s31 = sphi 0, %s38
      %s32 = sphi 0, %s30
      %s33 = sphi 0, %s31
      %s34 = sphi 0, %s32
      %s35 = sphi 0, %s33
      %s45 = sphi 0, %s47
      %s48 = sphi 0, %s45
      %s49 = sphi 0, %s48
      %s65 = sphi 0, %s49
      %s71 = sphi 0, %s73
      %s74 = sphi 0, %s71
      %s75 = sphi 0, %s74
      %s91 = sphi 0, %s75
      %s95 = sphi 0, %s95
      %s97 = sphi 0, %s95
      %s98 = sphi 0, %s97
      %s112 = sphi 0, %s98
      %s116 = sphi 0, %s116
      %s118 = sphi 0, %s116
      %s119 = sphi 0, %s118
      %s133 = sphi 0, %s119
      %s141 = sphi 0, %s143
      %s144 = sphi 0, %s141
      %s145 = sphi 0, %s144
      %s161 = sphi 0, %s145
      %s169 = sphi 0, %s171
      %s172 = sphi 0, %s169
      %s173 = sphi 0, %s172
      %s189 = sphi 0, %s173
      %s197 = sphi 0, %s199
      %s200 = sphi 0, %s197
      %s201 = sphi 0, %s200
      %s217 = sphi 0, %s201
    $region4: #{tpu_custom_call.1} parent=1 // loop_header_branch
      %26 = sbr.rel (%p24) target = $region8
    $region5: #{tpu_custom_call.1} parent=1 // loop_body
      %s28 = ssub.s32 %s23, 1
      %s29 = ssub.s32 %s23, 2
      %s36 = sadd.s32 1, %s31
      %p37 = scmp.ge.s32.totalorder %s36, 1
      %s38 = scalar_select %p37, 0, %s36
      %s39 = sadd.s32 1, %s30
      %s40 = scalar_select %p37, %s39, %s30
      %p41 = scmp.ge.s32.totalorder %s40, 2
      %s42 = scalar_select %p41, 0, %s40
      %s43 = ssub.s32 %s30, %s42
      %p44 = scmp.eq.s32.totalorder %s43, 0
      %s46 = sadd.s32 %s45, 1
      %s47 = scalar_select %p44, %s45, %s46
      %p50 = pneg %p44
      %p51 = scmp.eq.s32.totalorder %s23, 1
      %p52 = por %p50, %p51
      %p53 = scmp.ne.s32.totalorder %s45, %s48
      %p54 = scmp.eq.s32.totalorder %s23, 0
      %p55 = por %p53, %p54
      %p56 = scmp.ne.s32.totalorder %s45, %s48
      %p57 = scmp.eq.s32.totalorder %s28, 1
      %p58 = por %p56, %p57
      %p59 = scmp.ne.s32.totalorder %s48, %s49
      %p60 = scmp.eq.s32.totalorder %s28, 0
      %p61 = por %p59, %p60
      %p62 = scmp.ne.s32.totalorder %s48, %s49
      %p63 = scmp.eq.s32.totalorder %s29, 1
      %p64 = por %p62, %p63
      %p66 = scmp.ne.s32.totalorder %s49, %s65
      %p67 = scmp.eq.s32.totalorder %s29, 0
      %p68 = por %p66, %p67
      %s69 = ssub.s32 %s30, %s42
      %p70 = scmp.eq.s32.totalorder %s69, 0
      %s72 = sadd.s32 %s71, 1
      %s73 = scalar_select %p70, %s71, %s72
      %p76 = pneg %p70
      %p77 = scmp.eq.s32.totalorder %s23, 1
      %p78 = por %p76, %p77
      %p79 = scmp.ne.s32.totalorder %s71, %s74
      %p80 = scmp.eq.s32.totalorder %s23, 0
      %p81 = por %p79, %p80
      %p82 = scmp.ne.s32.totalorder %s71, %s74
      %p83 = scmp.eq.s32.totalorder %s28, 1
      %p84 = por %p82, %p83
      %p85 = scmp.ne.s32.totalorder %s74, %s75
      %p86 = scmp.eq.s32.totalorder %s28, 0
      %p87 = por %p85, %p86
      %p88 = scmp.ne.s32.totalorder %s74, %s75
      %p89 = scmp.eq.s32.totalorder %s29, 1
      %p90 = por %p88, %p89
      %p92 = scmp.ne.s32.totalorder %s75, %s91
      %p93 = scmp.eq.s32.totalorder %s29, 0
      %p94 = por %p92, %p93
      %s96 = sadd.s32 %s95, 1
      %p99 = scmp.eq.s32.totalorder %s23, 1
      %p100 = scmp.ne.s32.totalorder %s95, %s97
      %p101 = scmp.eq.s32.totalorder %s23, 0
      %p102 = por %p100, %p101
      %p103 = scmp.ne.s32.totalorder %s95, %s97
      %p104 = scmp.eq.s32.totalorder %s28, 1
      %p105 = por %p103, %p104
      %p106 = scmp.ne.s32.totalorder %s97, %s98
      %p107 = scmp.eq.s32.totalorder %s28, 0
      %p108 = por %p106, %p107
      %p109 = scmp.ne.s32.totalorder %s97, %s98
      %p110 = scmp.eq.s32.totalorder %s29, 1
      %p111 = por %p109, %p110
      %p113 = scmp.ne.s32.totalorder %s98, %s112
      %p114 = scmp.eq.s32.totalorder %s29, 0
      %p115 = por %p113, %p114
      %s117 = sadd.s32 %s116, 1
      %p120 = scmp.eq.s32.totalorder %s23, 1
      %p121 = scmp.ne.s32.totalorder %s116, %s118
      %p122 = scmp.eq.s32.totalorder %s23, 0
      %p123 = por %p121, %p122
      %p124 = scmp.ne.s32.totalorder %s116, %s118
      %p125 = scmp.eq.s32.totalorder %s28, 1
      %p126 = por %p124, %p125
      %p127 = scmp.ne.s32.totalorder %s118, %s119
      %p128 = scmp.eq.s32.totalorder %s28, 0
      %p129 = por %p127, %p128
      %p130 = scmp.ne.s32.totalorder %s118, %s119
      %p131 = scmp.eq.s32.totalorder %s29, 1
      %p132 = por %p130, %p131
      %p134 = scmp.ne.s32.totalorder %s119, %s133
      %p135 = scmp.eq.s32.totalorder %s29, 0
      %p136 = por %p134, %p135
      %s137 = ssub.s32 %s30, %s42
      %s138 = ssub.s32 %s31, %s38
      %s139 = sor.u32 %s137, %s138
      %p140 = scmp.eq.s32.totalorder %s139, 0
      %s142 = sadd.s32 %s141, 1
      %s143 = scalar_select %p140, %s141, %s142
      %p146 = pneg %p140
      %p147 = scmp.eq.s32.totalorder %s23, 1
      %p148 = por %p146, %p147
      %p149 = scmp.ne.s32.totalorder %s141, %s144
      %p150 = scmp.eq.s32.totalorder %s23, 0
      %p151 = por %p149, %p150
      %p152 = scmp.ne.s32.totalorder %s141, %s144
      %p153 = scmp.eq.s32.totalorder %s28, 1
      %p154 = por %p152, %p153
      %p155 = scmp.ne.s32.totalorder %s144, %s145
      %p156 = scmp.eq.s32.totalorder %s28, 0
      %p157 = por %p155, %p156
      %p158 = scmp.ne.s32.totalorder %s144, %s145
      %p159 = scmp.eq.s32.totalorder %s29, 1
      %p160 = por %p158, %p159
      %p162 = scmp.ne.s32.totalorder %s145, %s161
      %p163 = scmp.eq.s32.totalorder %s29, 0
      %p164 = por %p162, %p163
      %s165 = ssub.s32 %s30, %s42
      %s166 = ssub.s32 %s31, %s38
      %s167 = sor.u32 %s165, %s166
      %p168 = scmp.eq.s32.totalorder %s167, 0
      %s170 = sadd.s32 %s169, 1
      %s171 = scalar_select %p168, %s169, %s170
      %p174 = pneg %p168
      %p175 = scmp.eq.s32.totalorder %s23, 1
      %p176 = por %p174, %p175
      %p177 = scmp.ne.s32.totalorder %s169, %s172
      %p178 = scmp.eq.s32.totalorder %s23, 0
      %p179 = por %p177, %p178
      %p180 = scmp.ne.s32.totalorder %s169, %s172
      %p181 = scmp.eq.s32.totalorder %s28, 1
      %p182 = por %p180, %p181
      %p183 = scmp.ne.s32.totalorder %s172, %s173
      %p184 = scmp.eq.s32.totalorder %s28, 0
      %p185 = por %p183, %p184
      %p186 = scmp.ne.s32.totalorder %s172, %s173
      %p187 = scmp.eq.s32.totalorder %s29, 1
      %p188 = por %p186, %p187
      %p190 = scmp.ne.s32.totalorder %s173, %s189
      %p191 = scmp.eq.s32.totalorder %s29, 0
      %p192 = por %p190, %p191
      %s193 = ssub.s32 %s30, %s42
      %s194 = ssub.s32 %s31, %s38
      %s195 = sor.u32 %s193, %s194
      %p196 = scmp.eq.s32.totalorder %s195, 0
      %s198 = sadd.s32 %s197, 1
      %s199 = scalar_select %p196, %s197, %s198
      %p202 = pneg %p196
      %p203 = scmp.eq.s32.totalorder %s23, 1
      %p204 = por %p202, %p203
      %p205 = scmp.ne.s32.totalorder %s197, %s200
      %p206 = scmp.eq.s32.totalorder %s23, 0
      %p207 = por %p205, %p206
      %p208 = scmp.ne.s32.totalorder %s197, %s200
      %p209 = scmp.eq.s32.totalorder %s28, 1
      %p210 = por %p208, %p209
      %p211 = scmp.ne.s32.totalorder %s200, %s201
      %p212 = scmp.eq.s32.totalorder %s28, 0
      %p213 = por %p211, %p212
      %p214 = scmp.ne.s32.totalorder %s200, %s201
      %p215 = scmp.eq.s32.totalorder %s29, 1
      %p216 = por %p214, %p215
      %p218 = scmp.ne.s32.totalorder %s201, %s217
      %p219 = scmp.eq.s32.totalorder %s29, 0
      %p220 = por %p218, %p219
      %p221 = scmp.le.s32.totalorder 1, %s23
      %p222 = scmp.lt.s32.totalorder %s23, 3
      %p223 = pnand %p221, %p222
      %p224 = pneg %p223
      // Predicated region
      $region9: #{tpu_custom_call.1} parent=5 // pred_check
        _
      $region10: #{tpu_custom_call.1} parent=5 // pred_check_branch
        %226 = sbr.rel (%p223) target = $region12
      $region11: #{tpu_custom_call.1} parent=5 // pred_region
        %s227 = ssub.s32 %s23, 1
        // Predicated region
        $region13: #{tpu_custom_call.1} parent=11 // pred_check
          %p228 = pneg %p108
        $region14: #{tpu_custom_call.1} parent=11 // pred_check_branch
          %230 = sbr.rel (%p228) target = $region16
        $region15: #{tpu_custom_call.1} parent=11 // pred_region
          %s232 = ssub.s32 256, 256
          %233 = vsyncadd [#allocation6], %s232
          %s234 = sshll.u32 [#allocation5], 4
          %s235 = int_to_ptr.vmem [resolvable:$true] %s234
          %240 = dma.hbm_to_vmem [thread:$0]  %s2, 256, %s235, [#allocation6], 64, 64, 4
        $region16: #{tpu_custom_call.1} parent=11 // pred_fallthru
          _
        // Predicated region
        $region17: #{tpu_custom_call.1} parent=11 // pred_check
          %p241 = pneg %p129
        $region18: #{tpu_custom_call.1} parent=11 // pred_check_branch
          %243 = sbr.rel (%p241) target = $region20
        $region19: #{tpu_custom_call.1} parent=11 // pred_region
          _
        $region20: #{tpu_custom_call.1} parent=11 // pred_fallthru
          _
      $region12: #{tpu_custom_call.1} parent=5 // pred_fallthru
        _
      %p244 = scmp.lt.s32.totalorder %s23, 2
      // Predicated region
      $region21: #{tpu_custom_call.1} parent=5 // pred_check
        %p245 = pneg %p244
      $region22: #{tpu_custom_call.1} parent=5 // pred_check_branch
        %247 = sbr.rel (%p245) target = $region24
      $region23: #{tpu_custom_call.1} parent=5 // pred_region
        // Predicated region
        $region25: #{tpu_custom_call.1} parent=23 // pred_check
          %p248 = pneg %p55
        $region26: #{tpu_custom_call.1} parent=23 // pred_check_branch
          %250 = sbr.rel (%p248) target = $region28
        $region27: #{tpu_custom_call.1} parent=23 // pred_region
          %s251 = sand.u32 %s45, 1
          %s252 = scalar_lea.sflag [#allocation3], %s251
          %s253 = sand.u32 %s45, 1
          %s254 = smul.addr %s253, 4
          %s255 = scalar_lea.vmem [#allocation2], %s254
          %s257 = ssub.s32 64, 64
          %258 = vsyncadd %s252, %s257
          %s259 = smul.addr %s30, 64
          %s260 = scalar_lea.hbm %s0, %s259
          %s262 = sshll.u32 %s255, 4
          %s263 = int_to_ptr.vmem [resolvable:$true] %s262
          %265 = dma.hbm_to_vmem [thread:$0]  %s260, 64, %s263, %s252
        $region28: #{tpu_custom_call.1} parent=23 // pred_fallthru
          _
        // Predicated region
        $region29: #{tpu_custom_call.1} parent=23 // pred_check
          %p266 = pneg %p81
        $region30: #{tpu_custom_call.1} parent=23 // pred_check_branch
          %268 = sbr.rel (%p266) target = $region32
        $region31: #{tpu_custom_call.1} parent=23 // pred_region
          %p269 = scmp.lt.s32.totalorder %s30, 1
          %s270 = scalar_select %p269, %s30, 1
          %s271 = scalar_lea.vmem %s1, %s270
        $region32: #{tpu_custom_call.1} parent=23 // pred_fallthru
          _
      $region24: #{tpu_custom_call.1} parent=5 // pred_fallthru
        _
      %p272 = scmp.le.s32.totalorder 1, %s23
      %p273 = scmp.lt.s32.totalorder %s23, 3
      %p274 = pnand %p272, %p273
      %p275 = pneg %p274
      // Predicated region
      $region33: #{tpu_custom_call.1} parent=5 // pred_check
        _
      $region34: #{tpu_custom_call.1} parent=5 // pred_check_branch
        %277 = sbr.rel (%p274) target = $region36
      $region35: #{tpu_custom_call.1} parent=5 // pred_region
        %s278 = ssub.s32 %s23, 1
        %s279 = sand.u32 %s48, 1
        %s280 = scalar_lea.sflag [#allocation3], %s279
        %s281 = sand.u32 %s48, 1
        %s282 = smul.addr %s281, 4
        %s283 = scalar_lea.vmem [#allocation2], %s282
        // Predicated region
        $region37: #{tpu_custom_call.1} parent=35 // pred_check
          %p284 = pneg %p61
        $region38: #{tpu_custom_call.1} parent=35 // pred_check_branch
          %286 = sbr.rel (%p284) target = $region40
        $region39: #{tpu_custom_call.1} parent=35 // pred_region
          %287 = dma.done %s280, 64
        $region40: #{tpu_custom_call.1} parent=35 // pred_fallthru
          _
        // Predicated region
        $region41: #{tpu_custom_call.1} parent=35 // pred_check
          %p288 = pneg %p108
        $region42: #{tpu_custom_call.1} parent=35 // pred_check_branch
          %290 = sbr.rel (%p288) target = $region44
        $region43: #{tpu_custom_call.1} parent=35 // pred_region
          %291 = dma.done [#allocation6], 256
        $region44: #{tpu_custom_call.1} parent=35 // pred_fallthru
          _
        %s292 = sand.u32 %s48, 1
        %s293 = scalar_lea.sflag [#allocation3], %s292
        %s294 = sand.u32 %s48, 1
        %s295 = smul.addr %s294, 4
        %s296 = scalar_lea.vmem [#allocation2], %s295
        %p297 = pneg %p61
        %p298 = pneg %p58
        %p299 = scmp.lt.s32.totalorder %s32, 1
        %s300 = scalar_select %p299, %s32, 1
        %s301 = scalar_lea.vmem %s1, %s300
        %p302 = pneg %p87
        %p303 = pneg %p84
        %p304 = pneg %p108
        %p305 = pneg %p105
        %p306 = pneg %p129
        %p307 = pneg %p126
        %p308 = pneg %p157
        %p309 = pneg %p154
        %s310 = sand.u32 %s144, 1
        %s311 = scalar_lea.sflag [#allocation4], %s310
        %s312 = sand.u32 %s144, 1
        %s313 = smul.addr %s312, 4
        %s314 = scalar_lea.vmem [#allocation7], %s313
        %p315 = pneg %p185
        %p316 = pneg %p182
        %s317 = sand.u32 %s28, 1
        %s318 = scalar_lea.sflag [#allocation9], %s317
        %s319 = sand.u32 %s172, 1
        %s320 = smul.addr %s319, 16
        %s321 = scalar_lea.vmem [#allocation8], %s320
        %p322 = pneg %p213
        %p323 = pneg %p210
        %s324 = sand.u32 %s28, 1
        %s325 = scalar_lea.sflag [#allocation9], %s324
        %s326 = sand.u32 %s200, 1
        %s327 = smul.addr %s326, 16
        %s328 = scalar_lea.vmem [#allocation10], %s327
        %p329 = scmp.lt.s32.totalorder %s32, 1
        %s330 = scalar_select %p329, %s32, 1
        %s331 = scalar_lea.vmem %s1, %s330
        %s332 = smul.u32 4, %s33
        %s333 = smul.u32 4, %s33
        %v335 = vld [vmem:[%s283] sm:$0xf]
        %v336 = vld [vmem:[%s331] sm:$0x1]
        %v337 = vld [vmem:[#allocation5] sm:$0xf]
        %v338 = vld [vmem:[#allocation5 + $0x4] sm:$0xf]
        %v339 = vld [vmem:[#allocation5 + $0x8] sm:$0xf]
        %v340 = vld [vmem:[#allocation5 + $0xc] sm:$0xf]
        %v341 = vld [vmem:[%s3] sm:$0x1]
        %v343 = vlaneseq
        %v344 = vshrl.u32 %v343, 7
        %v345 = vsub.s32 0, %v344
        %v346 = vrot.slane %v341, %v345
        %v352 = vunpack.c.l.b16 %v337
        %v353 = vunpack.c.l.b16 %v338
        %v354 = vunpack.c.l.b16 %v339
        %v355 = vunpack.c.l.b16 %v340
        %v356 = vpack.c.b16 %v353, %v352
        %v357 = vpack.c.b16 %v355, %v354
        %vm360 = vcmask 261120
        %v362 = vsel %vm360, %v335, 0
        %364 = vmatprep.subr.bf16.mxu0 0
        %365 = vmatpush1.bf16.msra.mxu0 %v356
        %366 = vmatprep.subr.bf16.mxu0 0
        %367 = vmatpush1.bf16.msra.mxu0 %v357
        %368 = vmatprep.subr.bf16.mxu0 0
        %369 = vmatpush1.bf16.msra.mxu0 0
        %370 = vmatprep.subr.bf16.mxu0 0
        %371 = vmatpush1.bf16.msra.mxu0 0
        %372 = vmatprep.subr.bf16.mxu0 0
        %373 = vmatpush1.bf16.msra.mxu0 0
        %374 = vmatprep.subr.bf16.mxu0 0
        %375 = vmatpush1.bf16.msra.mxu0 0
        %376 = vmatprep.subr.bf16.mxu0 0
        %377 = vmatpush1.bf16.msra.mxu0 0
        %378 = vmatprep.subr.bf16.mxu0 0
        %379 = vmatpush1.bf16.msra.mxu0 0
        %380 = vmatprep.subr.bf16.mxu0 0
        %381 = vmatpush1.bf16.msra.mxu0 0
        %382 = vmatprep.subr.bf16.mxu0 0
        %383 = vmatpush1.bf16.msra.mxu0 0
        %384 = vmatprep.subr.bf16.mxu0 0
        %385 = vmatpush1.bf16.msra.mxu0 0
        %386 = vmatprep.subr.bf16.mxu0 0
        %387 = vmatpush1.bf16.msra.mxu0 0
        %388 = vmatprep.subr.bf16.mxu0 0
        %389 = vmatpush1.bf16.msra.mxu0 0
        %390 = vmatprep.subr.bf16.mxu0 0
        %391 = vmatpush1.bf16.msra.mxu0 0
        %392 = vmatprep.subr.bf16.mxu0 0
        %393 = vmatpush1.bf16.msra.mxu0 0
        %394 = vmatprep.subr.bf16.mxu0 0
        %395 = vmatpush1.bf16.msra.mxu0 0
        %396 = vmatprep.mubr.bf16.mxu0 0
        %397 = vmatmul.mubr.bf16.gmra.mrb[0].mxu0 %v362
        %v398 = vpop.f32.mrb[0].mxu0
        %v399 = vadd.f32 %v346, %v398
        %v400 = vpop.f32.mrb[0].mxu0
        %v401 = vpop.f32.mrb[0].mxu0
        %v402 = vpop.f32.mrb[0].mxu0
        %403 = vdwg.mxu0
        %v404 = vpack.c.bf16 %v399, %v399
        %v406 = vunpack.c.l.b16 %v404
        %v407 = vpack.c.b16 %v406, %v406
        %408 = vrot.lane.b32.xlu0 %v407, 96
        %v409 = vpop.permute.xlu0 %408
        %vm411 = vcmask 60416
        %412 = vst.msk [vmem:[%s321] sm:$0xf] %vm411, %v409
        %413 = vrot.lane.b32.xlu0 %v407, 64
        %v414 = vpop.permute.xlu0 %413
        %416 = vst.msk [vmem:[%s328] sm:$0xf] %vm411, %v414
        %v418 = vlaneseq
        %v419 = vshrl.u32 %v418, 7
        %v420 = vsub.s32 0, %v419
        %v421 = vrot.slane %v336, %v420
        %423 = vrot.lane.b32.xlu0 %v404, 96
        %v424 = vpop.permute.xlu0 %423
        %vm425 = vcmask 64512
        %v427 = vsel %vm425, %v404, 0
        %v430 = vsel %vm425, %v424, 0
        %432 = vmatprep.subr.bf16.mxu0 0
        %433 = vmatpush1.bf16.xpose.msra.mxu0 %v430
        %434 = vmatprep.subr.bf16.mxu0 0
        %435 = vmatpush1.bf16.xpose.msra.mxu0 0
        %436 = vmatprep.subr.bf16.mxu0 0
        %437 = vmatpush1.bf16.xpose.msra.mxu0 0
        %438 = vmatprep.subr.bf16.mxu0 0
        %439 = vmatpush1.bf16.xpose.msra.mxu0 0
        %440 = vmatprep.subr.bf16.mxu0 0
        %441 = vmatpush1.bf16.xpose.msra.mxu0 0
        %442 = vmatprep.subr.bf16.mxu0 0
        %443 = vmatpush1.bf16.xpose.msra.mxu0 0
        %444 = vmatprep.subr.bf16.mxu0 0
        %445 = vmatpush1.bf16.xpose.msra.mxu0 0
        %446 = vmatprep.subr.bf16.mxu0 0
        %447 = vmatpush1.bf16.xpose.msra.mxu0 0
        %448 = vmatprep.subr.bf16.mxu0 0
        %449 = vmatpush1.bf16.xpose.msra.mxu0 0
        %450 = vmatprep.subr.bf16.mxu0 0
        %451 = vmatpush1.bf16.xpose.msra.mxu0 0
        %452 = vmatprep.subr.bf16.mxu0 0
        %453 = vmatpush1.bf16.xpose.msra.mxu0 0
        %454 = vmatprep.subr.bf16.mxu0 0
        %455 = vmatpush1.bf16.xpose.msra.mxu0 0
        %456 = vmatprep.subr.bf16.mxu0 0
        %457 = vmatpush1.bf16.xpose.msra.mxu0 0
        %458 = vmatprep.subr.bf16.mxu0 0
        %459 = vmatpush1.bf16.xpose.msra.mxu0 0
        %460 = vmatprep.subr.bf16.mxu0 0
        %461 = vmatpush1.bf16.xpose.msra.mxu0 0
        %462 = vmatprep.subr.bf16.mxu0 0
        %463 = vmatpush1.bf16.xpose.msra.mxu0 0
        %464 = vmatprep.mubr.bf16.mxu0 0
        %465 = vmatmul.mubr.bf16.gmra.mrb[0].mxu0 %v427
        %v466 = vpop.f32.mrb[0].mxu0
        %v467 = vadd.f32 %v421, %v466
        %v468 = vpop.f32.mrb[0].mxu0
        %v469 = vpop.f32.mrb[0].mxu0
        %v470 = vpop.f32.mrb[0].mxu0
        %471 = vdwg.mxu0
        %v472 = vsel %vm425, %v467, -inf
        %473 = vmax.xlane.f32.xlu0 %v472
        %v474 = vpop.xlane.xlu0 %473
        %v475 = vsub.f32 %v467, %v474
        %v476 = vmul.f32 %v475, 1.442695
        %v477 = vpow.pop %v476
        %v478 = vsel %vm425, %v477, 0.0
        %479 = vadd.xlane.f32.xlu0 %v478
        %v480 = vpop.xlane.xlu0 %479
        %v481 = vrcp.pop %v480
        %v482 = vmul.f32 %v477, %v481
        %v483 = vpack.c.bf16 %v482, %v482
        %484 = vrot.lane.b32.xlu0 %v404, 64
        %v485 = vpop.permute.xlu0 %484
        %v487 = vsel %vm425, %v483, 0
        %vm489 = vcmask 1043456
        %v491 = vsel %vm489, %v485, 0
        %493 = vmatprep.subr.bf16.mxu0 0
        %494 = vmatpush1.bf16.msra.mxu0 %v491
        %495 = vmatprep.subr.bf16.mxu0 0
        %496 = vmatpush1.bf16.msra.mxu0 0
        %497 = vmatprep.subr.bf16.mxu0 0
        %498 = vmatpush1.bf16.msra.mxu0 0
        %499 = vmatprep.subr.bf16.mxu0 0
        %500 = vmatpush1.bf16.msra.mxu0 0
        %501 = vmatprep.subr.bf16.mxu0 0
        %502 = vmatpush1.bf16.msra.mxu0 0
        %503 = vmatprep.subr.bf16.mxu0 0
        %504 = vmatpush1.bf16.msra.mxu0 0
        %505 = vmatprep.subr.bf16.mxu0 0
        %506 = vmatpush1.bf16.msra.mxu0 0
        %507 = vmatprep.subr.bf16.mxu0 0
        %508 = vmatpush1.bf16.msra.mxu0 0
        %509 = vmatprep.subr.bf16.mxu0 0
        %510 = vmatpush1.bf16.msra.mxu0 0
        %511 = vmatprep.subr.bf16.mxu0 0
        %512 = vmatpush1.bf16.msra.mxu0 0
        %513 = vmatprep.subr.bf16.mxu0 0
        %514 = vmatpush1.bf16.msra.mxu0 0
        %515 = vmatprep.subr.bf16.mxu0 0
        %516 = vmatpush1.bf16.msra.mxu0 0
        %517 = vmatprep.subr.bf16.mxu0 0
        %518 = vmatpush1.bf16.msra.mxu0 0
        %519 = vmatprep.subr.bf16.mxu0 0
        %520 = vmatpush1.bf16.msra.mxu0 0
        %521 = vmatprep.subr.bf16.mxu0 0
        %522 = vmatpush1.bf16.msra.mxu0 0
        %523 = vmatprep.subr.bf16.mxu0 0
        %524 = vmatpush1.bf16.msra.mxu0 0
        %525 = vmatprep.mubr.bf16.mxu0 0
        %526 = vmatmul.mubr.bf16.gmra.mrb[0].mxu0 %v487
        %v527 = vpop.f32.mrb[0].mxu0
        %v528 = vadd.f32 0.0, %v527
        %v529 = vpop.f32.mrb[0].mxu0
        %v530 = vpop.f32.mrb[0].mxu0
        %v531 = vpop.f32.mrb[0].mxu0
        %532 = vdwg.mxu0
        %533 = vrot.lane.b32.xlu0 %v407, 88
        %v534 = vpop.permute.xlu0 %533
        %s536 = scalar_lea.vmem %s321, 4 [#allocation8]
        %537 = vst.msk [vmem:[%s536] sm:$0xf] %vm411, %v534
        %538 = vrot.lane.b32.xlu0 %v407, 56
        %v539 = vpop.permute.xlu0 %538
        %s541 = scalar_lea.vmem %s328, 4 [#allocation10]
        %542 = vst.msk [vmem:[%s541] sm:$0xf] %vm411, %v539
        %543 = vrot.lane.b32.xlu0 %v404, 120
        %v544 = vpop.permute.xlu0 %543
        %545 = vrot.lane.b32.xlu0 %v404, 88
        %v546 = vpop.permute.xlu0 %545
        %v548 = vsel %vm425, %v544, 0
        %v551 = vsel %vm425, %v546, 0
        %553 = vmatprep.subr.bf16.mxu0 0
        %554 = vmatpush1.bf16.xpose.msra.mxu0 %v551
        %555 = vmatprep.subr.bf16.mxu0 0
        %556 = vmatpush1.bf16.xpose.msra.mxu0 0
        %557 = vmatprep.subr.bf16.mxu0 0
        %558 = vmatpush1.bf16.xpose.msra.mxu0 0
        %559 = vmatprep.subr.bf16.mxu0 0
        %560 = vmatpush1.bf16.xpose.msra.mxu0 0
        %561 = vmatprep.subr.bf16.mxu0 0
        %562 = vmatpush1.bf16.xpose.msra.mxu0 0
        %563 = vmatprep.subr.bf16.mxu0 0
        %564 = vmatpush1.bf16.xpose.msra.mxu0 0
        %565 = vmatprep.subr.bf16.mxu0 0
        %566 = vmatpush1.bf16.xpose.msra.mxu0 0
        %567 = vmatprep.subr.bf16.mxu0 0
        %568 = vmatpush1.bf16.xpose.msra.mxu0 0
        %569 = vmatprep.subr.bf16.mxu0 0
        %570 = vmatpush1.bf16.xpose.msra.mxu0 0
        %571 = vmatprep.subr.bf16.mxu0 0
        %572 = vmatpush1.bf16.xpose.msra.mxu0 0
        %573 = vmatprep.subr.bf16.mxu0 0
        %574 = vmatpush1.bf16.xpose.msra.mxu0 0
        %575 = vmatprep.subr.bf16.mxu0 0
        %576 = vmatpush1.bf16.xpose.msra.mxu0 0
        %577 = vmatprep.subr.bf16.mxu0 0
        %578 = vmatpush1.bf16.xpose.msra.mxu0 0
        %579 = vmatprep.subr.bf16.mxu0 0
        %580 = vmatpush1.bf16.xpose.msra.mxu0 0
        %581 = vmatprep.subr.bf16.mxu0 0
        %582 = vmatpush1.bf16.xpose.msra.mxu0 0
        %583 = vmatprep.subr.bf16.mxu0 0
        %584 = vmatpush1.bf16.xpose.msra.mxu0 0
        %585 = vmatprep.mubr.bf16.mxu0 0
        %586 = vmatmul.mubr.bf16.gmra.mrb[0].mxu0 %v548
        %v587 = vpop.f32.mrb[0].mxu0
        %v588 = vadd.f32 %v421, %v587
        %v589 = vpop.f32.mrb[0].mxu0
        %v590 = vpop.f32.mrb[0].mxu0
        %v591 = vpop.f32.mrb[0].mxu0
        %592 = vdwg.mxu0
        %v593 = vsel %vm425, %v588, -inf
        %594 = vmax.xlane.f32.xlu0 %v593
        %v595 = vpop.xlane.xlu0 %594
        %v596 = vsub.f32 %v588, %v595
        %v597 = vmul.f32 %v596, 1.442695
        %v598 = vpow.pop %v597
        %v599 = vsel %vm425, %v598, 0.0
        %600 = vadd.xlane.f32.xlu0 %v599
        %v601 = vpop.xlane.xlu0 %600
        %v602 = vrcp.pop %v601
        %v603 = vmul.f32 %v598, %v602
        %v604 = vpack.c.bf16 %v603, %v603
        %605 = vrot.lane.b32.xlu0 %v404, 56
        %v606 = vpop.permute.xlu0 %605
        %v608 = vsel %vm425, %v604, 0
        %v611 = vsel %vm489, %v606, 0
        %613 = vmatprep.subr.bf16.mxu0 0
        %614 = vmatpush1.bf16.msra.mxu0 %v611
        %615 = vmatprep.subr.bf16.mxu0 0
        %616 = vmatpush1.bf16.msra.mxu0 0
        %617 = vmatprep.subr.bf16.mxu0 0
        %618 = vmatpush1.bf16.msra.mxu0 0
        %619 = vmatprep.subr.bf16.mxu0 0
        %620 = vmatpush1.bf16.msra.mxu0 0
        %621 = vmatprep.subr.bf16.mxu0 0
        %622 = vmatpush1.bf16.msra.mxu0 0
        %623 = vmatprep.subr.bf16.mxu0 0
        %624 = vmatpush1.bf16.msra.mxu0 0
        %625 = vmatprep.subr.bf16.mxu0 0
        %626 = vmatpush1.bf16.msra.mxu0 0
        %627 = vmatprep.subr.bf16.mxu0 0
        %628 = vmatpush1.bf16.msra.mxu0 0
        %629 = vmatprep.subr.bf16.mxu0 0
        %630 = vmatpush1.bf16.msra.mxu0 0
        %631 = vmatprep.subr.bf16.mxu0 0
        %632 = vmatpush1.bf16.msra.mxu0 0
        %633 = vmatprep.subr.bf16.mxu0 0
        %634 = vmatpush1.bf16.msra.mxu0 0
        %635 = vmatprep.subr.bf16.mxu0 0
        %636 = vmatpush1.bf16.msra.mxu0 0
        %637 = vmatprep.subr.bf16.mxu0 0
        %638 = vmatpush1.bf16.msra.mxu0 0
        %639 = vmatprep.subr.bf16.mxu0 0
        %640 = vmatpush1.bf16.msra.mxu0 0
        %641 = vmatprep.subr.bf16.mxu0 0
        %642 = vmatpush1.bf16.msra.mxu0 0
        %643 = vmatprep.subr.bf16.mxu0 0
        %644 = vmatpush1.bf16.msra.mxu0 0
        %645 = vmatprep.mubr.bf16.mxu0 0
        %646 = vmatmul.mubr.bf16.gmra.mrb[0].mxu0 %v608
        %v647 = vpop.f32.mrb[0].mxu0
        %v648 = vadd.f32 0.0, %v647
        %v649 = vpop.f32.mrb[0].mxu0
        %v650 = vpop.f32.mrb[0].mxu0
        %v651 = vpop.f32.mrb[0].mxu0
        %652 = vdwg.mxu0
        %653 = vrot.lane.b32.xlu0 %v407, 80
        %v654 = vpop.permute.xlu0 %653
        %s656 = scalar_lea.vmem %s321, 8 [#allocation8]
        %657 = vst.msk [vmem:[%s656] sm:$0xf] %vm411, %v654
        %658 = vrot.lane.b32.xlu0 %v407, 48
        %v659 = vpop.permute.xlu0 %658
        %s661 = scalar_lea.vmem %s328, 8 [#allocation10]
        %662 = vst.msk [vmem:[%s661] sm:$0xf] %vm411, %v659
        %663 = vrot.lane.b32.xlu0 %v404, 112
        %v664 = vpop.permute.xlu0 %663
        %665 = vrot.lane.b32.xlu0 %v404, 80
        %v666 = vpop.permute.xlu0 %665
        %v668 = vsel %vm425, %v664, 0
        %v671 = vsel %vm425, %v666, 0
        %673 = vmatprep.subr.bf16.mxu0 0
        %674 = vmatpush1.bf16.xpose.msra.mxu0 %v671
        %675 = vmatprep.subr.bf16.mxu0 0
        %676 = vmatpush1.bf16.xpose.msra.mxu0 0
        %677 = vmatprep.subr.bf16.mxu0 0
        %678 = vmatpush1.bf16.xpose.msra.mxu0 0
        %679 = vmatprep.subr.bf16.mxu0 0
        %680 = vmatpush1.bf16.xpose.msra.mxu0 0
        %681 = vmatprep.subr.bf16.mxu0 0
        %682 = vmatpush1.bf16.xpose.msra.mxu0 0
        %683 = vmatprep.subr.bf16.mxu0 0
        %684 = vmatpush1.bf16.xpose.msra.mxu0 0
        %685 = vmatprep.subr.bf16.mxu0 0
        %686 = vmatpush1.bf16.xpose.msra.mxu0 0
        %687 = vmatprep.subr.bf16.mxu0 0
        %688 = vmatpush1.bf16.xpose.msra.mxu0 0
        %689 = vmatprep.subr.bf16.mxu0 0
        %690 = vmatpush1.bf16.xpose.msra.mxu0 0
        %691 = vmatprep.subr.bf16.mxu0 0
        %692 = vmatpush1.bf16.xpose.msra.mxu0 0
        %693 = vmatprep.subr.bf16.mxu0 0
        %694 = vmatpush1.bf16.xpose.msra.mxu0 0
        %695 = vmatprep.subr.bf16.mxu0 0
        %696 = vmatpush1.bf16.xpose.msra.mxu0 0
        %697 = vmatprep.subr.bf16.mxu0 0
        %698 = vmatpush1.bf16.xpose.msra.mxu0 0
        %699 = vmatprep.subr.bf16.mxu0 0
        %700 = vmatpush1.bf16.xpose.msra.mxu0 0
        %701 = vmatprep.subr.bf16.mxu0 0
        %702 = vmatpush1.bf16.xpose.msra.mxu0 0
        %703 = vmatprep.subr.bf16.mxu0 0
        %704 = vmatpush1.bf16.xpose.msra.mxu0 0
        %705 = vmatprep.mubr.bf16.mxu0 0
        %706 = vmatmul.mubr.bf16.gmra.mrb[0].mxu0 %v668
        %v707 = vpop.f32.mrb[0].mxu0
        %v708 = vadd.f32 %v421, %v707
        %v709 = vpop.f32.mrb[0].mxu0
        %v710 = vpop.f32.mrb[0].mxu0
        %v711 = vpop.f32.mrb[0].mxu0
        %712 = vdwg.mxu0
        %v713 = vsel %vm425, %v708, -inf
        %714 = vmax.xlane.f32.xlu0 %v713
        %v715 = vpop.xlane.xlu0 %714
        %v716 = vsub.f32 %v708, %v715
        %v717 = vmul.f32 %v716, 1.442695
        %v718 = vpow.pop %v717
        %v719 = vsel %vm425, %v718, 0.0
        %720 = vadd.xlane.f32.xlu0 %v719
        %v721 = vpop.xlane.xlu0 %720
        %v722 = vrcp.pop %v721
        %v723 = vmul.f32 %v718, %v722
        %v724 = vpack.c.bf16 %v723, %v723
        %725 = vrot.lane.b32.xlu0 %v404, 48
        %v726 = vpop.permute.xlu0 %725
        %v728 = vsel %vm425, %v724, 0
        %v731 = vsel %vm489, %v726, 0
        %733 = vmatprep.subr.bf16.mxu0 0
        %734 = vmatpush1.bf16.msra.mxu0 %v731
        %735 = vmatprep.subr.bf16.mxu0 0
        %736 = vmatpush1.bf16.msra.mxu0 0
        %737 = vmatprep.subr.bf16.mxu0 0
        %738 = vmatpush1.bf16.msra.mxu0 0
        %739 = vmatprep.subr.bf16.mxu0 0
        %740 = vmatpush1.bf16.msra.mxu0 0
        %741 = vmatprep.subr.bf16.mxu0 0
        %742 = vmatpush1.bf16.msra.mxu0 0
        %743 = vmatprep.subr.bf16.mxu0 0
        %744 = vmatpush1.bf16.msra.mxu0 0
        %745 = vmatprep.subr.bf16.mxu0 0
        %746 = vmatpush1.bf16.msra.mxu0 0
        %747 = vmatprep.subr.bf16.mxu0 0
        %748 = vmatpush1.bf16.msra.mxu0 0
        %749 = vmatprep.subr.bf16.mxu0 0
        %750 = vmatpush1.bf16.msra.mxu0 0
        %751 = vmatprep.subr.bf16.mxu0 0
        %752 = vmatpush1.bf16.msra.mxu0 0
        %753 = vmatprep.subr.bf16.mxu0 0
        %754 = vmatpush1.bf16.msra.mxu0 0
        %755 = vmatprep.subr.bf16.mxu0 0
        %756 = vmatpush1.bf16.msra.mxu0 0
        %757 = vmatprep.subr.bf16.mxu0 0
        %758 = vmatpush1.bf16.msra.mxu0 0
        %759 = vmatprep.subr.bf16.mxu0 0
        %760 = vmatpush1.bf16.msra.mxu0 0
        %761 = vmatprep.subr.bf16.mxu0 0
        %762 = vmatpush1.bf16.msra.mxu0 0
        %763 = vmatprep.subr.bf16.mxu0 0
        %764 = vmatpush1.bf16.msra.mxu0 0
        %765 = vmatprep.mubr.bf16.mxu0 0
        %766 = vmatmul.mubr.bf16.gmra.mrb[0].mxu0 %v728
        %v767 = vpop.f32.mrb[0].mxu0
        %v768 = vadd.f32 0.0, %v767
        %v769 = vpop.f32.mrb[0].mxu0
        %v770 = vpop.f32.mrb[0].mxu0
        %v771 = vpop.f32.mrb[0].mxu0
        %772 = vdwg.mxu0
        %773 = vrot.lane.b32.xlu0 %v407, 72
        %v774 = vpop.permute.xlu0 %773
        %s776 = scalar_lea.vmem %s321, 12 [#allocation8]
        %777 = vst.msk [vmem:[%s776] sm:$0xf] %vm411, %v774
        %778 = vrot.lane.b32.xlu0 %v407, 40
        %v779 = vpop.permute.xlu0 %778
        %s781 = scalar_lea.vmem %s328, 12 [#allocation10]
        %782 = vst.msk [vmem:[%s781] sm:$0xf] %vm411, %v779
        %783 = vrot.lane.b32.xlu0 %v404, 104
        %v784 = vpop.permute.xlu0 %783
        %785 = vrot.lane.b32.xlu0 %v404, 72
        %v786 = vpop.permute.xlu0 %785
        %v788 = vsel %vm425, %v784, 0
        %v791 = vsel %vm425, %v786, 0
        %793 = vmatprep.subr.bf16.mxu0 0
        %794 = vmatpush1.bf16.xpose.msra.mxu0 %v791
        %795 = vmatprep.subr.bf16.mxu0 0
        %796 = vmatpush1.bf16.xpose.msra.mxu0 0
        %797 = vmatprep.subr.bf16.mxu0 0
        %798 = vmatpush1.bf16.xpose.msra.mxu0 0
        %799 = vmatprep.subr.bf16.mxu0 0
        %800 = vmatpush1.bf16.xpose.msra.mxu0 0
        %801 = vmatprep.subr.bf16.mxu0 0
        %802 = vmatpush1.bf16.xpose.msra.mxu0 0
        %803 = vmatprep.subr.bf16.mxu0 0
        %804 = vmatpush1.bf16.xpose.msra.mxu0 0
        %805 = vmatprep.subr.bf16.mxu0 0
        %806 = vmatpush1.bf16.xpose.msra.mxu0 0
        %807 = vmatprep.subr.bf16.mxu0 0
        %808 = vmatpush1.bf16.xpose.msra.mxu0 0
        %809 = vmatprep.subr.bf16.mxu0 0
        %810 = vmatpush1.bf16.xpose.msra.mxu0 0
        %811 = vmatprep.subr.bf16.mxu0 0
        %812 = vmatpush1.bf16.xpose.msra.mxu0 0
        %813 = vmatprep.subr.bf16.mxu0 0
        %814 = vmatpush1.bf16.xpose.msra.mxu0 0
        %815 = vmatprep.subr.bf16.mxu0 0
        %816 = vmatpush1.bf16.xpose.msra.mxu0 0
        %817 = vmatprep.subr.bf16.mxu0 0
        %818 = vmatpush1.bf16.xpose.msra.mxu0 0
        %819 = vmatprep.subr.bf16.mxu0 0
        %820 = vmatpush1.bf16.xpose.msra.mxu0 0
        %821 = vmatprep.subr.bf16.mxu0 0
        %822 = vmatpush1.bf16.xpose.msra.mxu0 0
        %823 = vmatprep.subr.bf16.mxu0 0
        %824 = vmatpush1.bf16.xpose.msra.mxu0 0
        %825 = vmatprep.mubr.bf16.mxu0 0
        %826 = vmatmul.mubr.bf16.gmra.mrb[0].mxu0 %v788
        %v827 = vpop.f32.mrb[0].mxu0
        %v828 = vadd.f32 %v421, %v827
        %v829 = vpop.f32.mrb[0].mxu0
        %v830 = vpop.f32.mrb[0].mxu0
        %v831 = vpop.f32.mrb[0].mxu0
        %832 = vdwg.mxu0
        %v833 = vsel %vm425, %v828, -inf
        %834 = vmax.xlane.f32.xlu0 %v833
        %v835 = vpop.xlane.xlu0 %834
        %v836 = vsub.f32 %v828, %v835
        %v837 = vmul.f32 %v836, 1.442695
        %v838 = vpow.pop %v837
        %v839 = vsel %vm425, %v838, 0.0
        %840 = vadd.xlane.f32.xlu0 %v839
        %v841 = vpop.xlane.xlu0 %840
        %v842 = vrcp.pop %v841
        %v843 = vmul.f32 %v838, %v842
        %v844 = vpack.c.bf16 %v843, %v843
        %845 = vrot.lane.b32.xlu0 %v404, 40
        %v846 = vpop.permute.xlu0 %845
        %v848 = vsel %vm425, %v844, 0
        %v851 = vsel %vm489, %v846, 0
        %853 = vmatprep.subr.bf16.mxu0 0
        %854 = vmatpush1.bf16.msra.mxu0 %v851
        %855 = vmatprep.subr.bf16.mxu0 0
        %856 = vmatpush1.bf16.msra.mxu0 0
        %857 = vmatprep.subr.bf16.mxu0 0
        %858 = vmatpush1.bf16.msra.mxu0 0
        %859 = vmatprep.subr.bf16.mxu0 0
        %860 = vmatpush1.bf16.msra.mxu0 0
        %861 = vmatprep.subr.bf16.mxu0 0
        %862 = vmatpush1.bf16.msra.mxu0 0
        %863 = vmatprep.subr.bf16.mxu0 0
        %864 = vmatpush1.bf16.msra.mxu0 0
        %865 = vmatprep.subr.bf16.mxu0 0
        %866 = vmatpush1.bf16.msra.mxu0 0
        %867 = vmatprep.subr.bf16.mxu0 0
        %868 = vmatpush1.bf16.msra.mxu0 0
        %869 = vmatprep.subr.bf16.mxu0 0
        %870 = vmatpush1.bf16.msra.mxu0 0
        %871 = vmatprep.subr.bf16.mxu0 0
        %872 = vmatpush1.bf16.msra.mxu0 0
        %873 = vmatprep.subr.bf16.mxu0 0
        %874 = vmatpush1.bf16.msra.mxu0 0
        %875 = vmatprep.subr.bf16.mxu0 0
        %876 = vmatpush1.bf16.msra.mxu0 0
        %877 = vmatprep.subr.bf16.mxu0 0
        %878 = vmatpush1.bf16.msra.mxu0 0
        %879 = vmatprep.subr.bf16.mxu0 0
        %880 = vmatpush1.bf16.msra.mxu0 0
        %881 = vmatprep.subr.bf16.mxu0 0
        %882 = vmatpush1.bf16.msra.mxu0 0
        %883 = vmatprep.subr.bf16.mxu0 0
        %884 = vmatpush1.bf16.msra.mxu0 0
        %885 = vmatprep.mubr.bf16.mxu0 0
        %886 = vmatmul.mubr.bf16.gmra.mrb[0].mxu0 %v848
        %v887 = vpop.f32.mrb[0].mxu0
        %v888 = vadd.f32 0.0, %v887
        %v889 = vpop.f32.mrb[0].mxu0
        %v890 = vpop.f32.mrb[0].mxu0
        %v891 = vpop.f32.mrb[0].mxu0
        %892 = vdwg.mxu0
        %894 = vrot.lane.b32.xlu0 %v648, 8
        %v895 = vpop.permute.xlu0 %894
        %898 = vrot.lane.b32.xlu0 %v768, 16
        %v899 = vpop.permute.xlu0 %898
        %902 = vrot.lane.b32.xlu0 %v888, 24
        %v903 = vpop.permute.xlu0 %902
        %v905 = vsel %vm425, %v528, %v895
        %vm906 = vcmask 130048
        %v907 = vsel %vm906, %v905, %v899
        %vm908 = vcmask 195584
        %v909 = vsel %vm908, %v907, %v903
        %v910 = vpack.c.bf16 %v909, %v909
        %vm911 = vcmask 257024
        %912 = vst.msk [vmem:[%s314] sm:$0xf] %vm911, %v910
        %s913 = sand.u32 %s144, 1
        %s914 = scalar_lea.sflag [#allocation4], %s913
        %s915 = sand.u32 %s144, 1
        %s916 = smul.addr %s915, 4
        %s917 = scalar_lea.vmem [#allocation7], %s916
        %s918 = sand.u32 %s28, 1
        %s919 = scalar_lea.sflag [#allocation9], %s918
        %s920 = sand.u32 %s172, 1
        %s921 = smul.addr %s920, 16
        %s922 = scalar_lea.vmem [#allocation8], %s921
        %s923 = sand.u32 %s28, 1
        %s924 = scalar_lea.sflag [#allocation9], %s923
        %s925 = sand.u32 %s200, 1
        %s926 = smul.addr %s925, 16
        %s927 = scalar_lea.vmem [#allocation10], %s926
        // Predicated region
        $region45: #{tpu_custom_call.1} parent=35 // pred_check
          %p928 = pneg %p154
        $region46: #{tpu_custom_call.1} parent=35 // pred_check_branch
          %930 = sbr.rel (%p928) target = $region48
        $region47: #{tpu_custom_call.1} parent=35 // pred_region
          %s932 = ssub.s32 64, 64
          %933 = vsyncadd %s914, %s932
          %s934 = sadd.s32 %s33, %s32
          %s935 = smul.addr %s934, 64
          %s936 = scalar_lea.hbm %s4, %s935
          %s938 = sshll.u32 %s917, 4
          %s939 = int_to_ptr.vmem [resolvable:$true] %s938
          %941 = dma.vmem_to_hbm [thread:$0]  %s939, 64, %s936, %s914
        $region48: #{tpu_custom_call.1} parent=35 // pred_fallthru
          _
        // Predicated region
        $region49: #{tpu_custom_call.1} parent=35 // pred_check
          %p942 = pneg %p182
        $region50: #{tpu_custom_call.1} parent=35 // pred_check_branch
          %944 = sbr.rel (%p942) target = $region52
        $region51: #{tpu_custom_call.1} parent=35 // pred_region
          %s945 = smul.u32 4, %s33
          %s947 = ssub.s32 256, 256
          %948 = vsyncadd %s919, %s947
          %s949 = smul.addr %s32, 4
          %s950 = sadd.s32 %s945, %s949
          %s951 = smul.addr %s950, 64
          %s952 = scalar_lea.hbm %s5, %s951
          %s953 = sshll.u32 %s922, 4
          %s954 = int_to_ptr.vmem [resolvable:$true] %s953
          %959 = dma.vmem_to_hbm [thread:$0]  %s954, 256, %s952, %s919, 64, 64, 4
        $region52: #{tpu_custom_call.1} parent=35 // pred_fallthru
          _
        // Predicated region
        $region53: #{tpu_custom_call.1} parent=35 // pred_check
          %p960 = pneg %p210
        $region54: #{tpu_custom_call.1} parent=35 // pred_check_branch
          %962 = sbr.rel (%p960) target = $region56
        $region55: #{tpu_custom_call.1} parent=35 // pred_region
          %s963 = smul.u32 4, %s33
          %s965 = ssub.s32 256, 256
          %966 = vsyncadd %s924, %s965
          %s967 = smul.addr %s32, 4
          %s968 = sadd.s32 %s963, %s967
          %s969 = smul.addr %s968, 64
          %s970 = scalar_lea.hbm %s6, %s969
          %s971 = sshll.u32 %s927, 4
          %s972 = int_to_ptr.vmem [resolvable:$true] %s971
          %977 = dma.vmem_to_hbm [thread:$0]  %s972, 256, %s970, %s924, 64, 64, 4
        $region56: #{tpu_custom_call.1} parent=35 // pred_fallthru
          _
      $region36: #{tpu_custom_call.1} parent=5 // pred_fallthru
        _
      %p978 = scmp.le.s32.totalorder 2, %s23
      // Predicated region
      $region57: #{tpu_custom_call.1} parent=5 // pred_check
        %p979 = pneg %p978
      $region58: #{tpu_custom_call.1} parent=5 // pred_check_branch
        %981 = sbr.rel (%p979) target = $region60
      $region59: #{tpu_custom_call.1} parent=5 // pred_region
        %s982 = ssub.s32 %s23, 2
        // Predicated region
        $region61: #{tpu_custom_call.1} parent=59 // pred_check
          %p983 = pneg %p160
        $region62: #{tpu_custom_call.1} parent=59 // pred_check_branch
          %985 = sbr.rel (%p983) target = $region64
        $region63: #{tpu_custom_call.1} parent=59 // pred_region
          %s986 = sand.u32 %s145, 1
          %s987 = scalar_lea.sflag [#allocation4], %s986
          %s988 = sand.u32 %s145, 1
          %s989 = smul.addr %s988, 4
          %s990 = scalar_lea.vmem [#allocation7], %s989
          %991 = dma.done %s987, 64
        $region64: #{tpu_custom_call.1} parent=59 // pred_fallthru
          _
        // Predicated region
        $region65: #{tpu_custom_call.1} parent=59 // pred_check
          %p992 = pneg %p188
        $region66: #{tpu_custom_call.1} parent=59 // pred_check_branch
          %994 = sbr.rel (%p992) target = $region68
        $region67: #{tpu_custom_call.1} parent=59 // pred_region
          %s995 = sand.u32 %s29, 1
          %s996 = scalar_lea.sflag [#allocation9], %s995
          %s997 = sand.u32 %s173, 1
          %s998 = smul.addr %s997, 16
          %s999 = scalar_lea.vmem [#allocation8], %s998
          %1000 = dma.done %s996, 256
        $region68: #{tpu_custom_call.1} parent=59 // pred_fallthru
          _
        // Predicated region
        $region69: #{tpu_custom_call.1} parent=59 // pred_check
          %p1001 = pneg %p216
        $region70: #{tpu_custom_call.1} parent=59 // pred_check_branch
          %1003 = sbr.rel (%p1001) target = $region72
        $region71: #{tpu_custom_call.1} parent=59 // pred_region
          %s1004 = sand.u32 %s29, 1
          %s1005 = scalar_lea.sflag [#allocation9], %s1004
          %s1006 = sand.u32 %s201, 1
          %s1007 = smul.addr %s1006, 16
          %s1008 = scalar_lea.vmem [#allocation10], %s1007
          %1009 = dma.done %s1005, 256
        $region72: #{tpu_custom_call.1} parent=59 // pred_fallthru
          _
      $region60: #{tpu_custom_call.1} parent=5 // pred_fallthru
        _
    $region6: #{tpu_custom_call.1} parent=1 // loop_footer
      %s27 = sadd.s32 1, %s23
    $region7: #{tpu_custom_call.1} parent=1 // loop_footer_branch
      %22 = sbr.rel target = $region3
    $region8: #{tpu_custom_call.1} parent=1 // loop_exit
      _
    %1010 = vsyncpa [#allocation3], 1
    %s1011 = scalar_lea.sflag [#allocation3], 1
    %1012 = vsyncpa %s1011, 1
    %1013 = vsyncpa [#allocation6], 1
    %1014 = vsyncpa [#allocation4], 1
    %s1015 = scalar_lea.sflag [#allocation4], 1
    %1016 = vsyncpa %s1015, 1
    %1017 = vsyncpa [#allocation9], 1
    %s1018 = scalar_lea.sflag [#allocation9], 1
    %1019 = vsyncpa %s1018, 1

</llo_original>
